<compile_context>
chip_gen: v7x
topology: tpu7x:2x2x1
jax: 0.10.0
libtpu: 0.0.40
codegen_flags: <defaults>
</compile_context>

<pallas_src>
import jax
import jax.numpy as jnp
from jax import lax
from jax.experimental import pallas as pl
from jax.experimental.pallas import tpu as pltpu


def _lstm_recurrence_kernel(xp_ref, whh_ref, h_out_ref):
    # xp_ref:    (T, Bb, 4*Hp) f32  -- precomputed x @ W_ih^T + (b_ih + b_hh),
    #                                  gate order [i, f, o, g], each gate padded
    #                                  from H to Hp = 128 lanes (pad lanes = 0).
    # whh_ref:   (Hp, 4*Hp)    bf16 -- recurrent weights, transposed, gate-padded,
    #                                  pad rows zeroed.
    # h_out_ref: (Bb, Hp)      f32  -- final hidden state (real data in [:, :H]).
    T = xp_ref.shape[0]
    Bb = xp_ref.shape[1]
    Hp = whh_ref.shape[0]

    whh = whh_ref[...]  # hoisted once; bf16 MXU operand reused every step

    def step(t, carry):
        h, c = carry
        # Only the recurrent matmul remains on the serial critical path.
        gates = xp_ref[t] + jnp.dot(
            h.astype(jnp.bfloat16), whh, preferred_element_type=jnp.float32
        )  # (Bb, 4*Hp), f32
        # Gate order [i, f, o, g]: one sigmoid over the first 3*Hp lanes, one tanh.
        sig = jax.nn.sigmoid(gates[:, : 3 * Hp])
        g_g = jnp.tanh(gates[:, 3 * Hp:])
        i_g = sig[:, 0:Hp]
        f_g = sig[:, Hp:2 * Hp]
        o_g = sig[:, 2 * Hp:3 * Hp]
        c_new = f_g * c + i_g * g_g          # pad lanes stay exactly 0
        h_new = o_g * jnp.tanh(c_new)
        return (h_new, c_new)

    h0 = jnp.zeros((Bb, Hp), jnp.float32)
    c0 = jnp.zeros((Bb, Hp), jnp.float32)
    h_final, _ = lax.fori_loop(0, T, step, (h0, c0), unroll=True)
    h_out_ref[...] = h_final


def _pack_gate_weight(w, Hp):
    """w: (4H, K), PyTorch gate order rows [i, f, g, o].
    Returns (K, 4*Hp): transposed, reordered to [i, f, o, g], each gate's output
    lanes padded from H to Hp with zeros."""
    four_h = w.shape[0]
    H = four_h // 4
    i_w, f_w, g_w, o_w = jnp.split(w, 4, axis=0)
    pad = ((0, Hp - H), (0, 0))
    packed = jnp.concatenate(
        [jnp.pad(i_w, pad), jnp.pad(f_w, pad), jnp.pad(o_w, pad), jnp.pad(g_w, pad)],
        axis=0,
    )  # (4*Hp, K)
    return packed.T  # (K, 4*Hp)


def _pack_gate_bias(b, Hp):
    """b: (4H,) PyTorch gate order [i, f, g, o] -> (4*Hp,) order [i, f, o, g], padded."""
    H = b.shape[0] // 4
    i_b, f_b, g_b, o_b = jnp.split(b, 4)
    pad = (0, Hp - H)
    return jnp.concatenate(
        [jnp.pad(i_b, pad), jnp.pad(f_b, pad), jnp.pad(o_b, pad), jnp.pad(g_b, pad)]
    )


def _pick_batch_block(B):
    # Largest multiple-of-8 divisor of B (up to 64); otherwise one full-batch block.
    for cand in (64, 32, 16, 8):
        if B % cand == 0:
            return cand
    return B


def lstm_encoder(x, w_ih, w_hh, b_ih, b_hh):
    """x: (B, T, I) batch-first, like PyTorch. Returns final hidden state (B, H)."""
    B, T, I = x.shape
    H = w_hh.shape[1]                       # w_hh: (4H, H)
    Hp = ((H + 127) // 128) * 128           # pad each gate to a multiple of 128 lanes
    f32 = jnp.float32

    # Pack weights: transpose, reorder gates to [i, f, o, g], pad gate lanes.
    wih_p = _pack_gate_weight(w_ih.astype(f32), Hp)              # (I, 4*Hp)
    whh_p = _pack_gate_weight(w_hh.astype(f32), Hp)              # (H, 4*Hp)
    whh_p = jnp.pad(whh_p, ((0, Hp - H), (0, 0)))                # (Hp, 4*Hp), zero pad rows
    whh_p = whh_p.astype(jnp.bfloat16)                           # bf16 MXU operand
    bias_p = _pack_gate_bias((b_ih + b_hh).astype(f32), Hp)      # (4*Hp,)

    # Hoist the input projection + bias out of the recurrence (one batched matmul).
    x_tm = jnp.transpose(x, (1, 0, 2)).astype(f32)               # (T, B, I)
    x_proj = jnp.einsum(
        "tbi,ig->tbg", x_tm, wih_p, preferred_element_type=f32
    ) + bias_p                                                   # (T, B, 4*Hp)

    Bb = _pick_batch_block(B)
    grid = (B // Bb,)

    h_padded = pl.pallas_call(
        _lstm_recurrence_kernel,
        out_shape=jax.ShapeDtypeStruct((B, Hp), f32),
        grid=grid,
        in_specs=[
            pl.BlockSpec((T, Bb, 4 * Hp), lambda b: (0, b, 0)),
            pl.BlockSpec((Hp, 4 * Hp), lambda b: (0, 0)),
        ],
        out_specs=pl.BlockSpec((Bb, Hp), lambda b: (b, 0)),
        compiler_params=pltpu.CompilerParams(
            dimension_semantics=("parallel",)
        ),
    )(x_proj, whh_p)
    return h_padded[:, :H]


def _lstm_reference(x, w_ih, w_hh, b_ih, b_hh):
    """Pure-JAX f32 reference of PyTorch nn.LSTM final hidden state."""
    B, T, I = x.shape
    H = w_hh.shape[1]
    bias = b_ih + b_hh

    def step(carry, x_t):
        h, c = carry
        gates = x_t @ w_ih.T + h @ w_hh.T + bias
        i_g = jax.nn.sigmoid(gates[:, 0:H])
        f_g = jax.nn.sigmoid(gates[:, H:2 * H])
        g_g = jnp.tanh(gates[:, 2 * H:3 * H])
        o_g = jax.nn.sigmoid(gates[:, 3 * H:4 * H])
        c_new = f_g * c + i_g * g_g
        h_new = o_g * jnp.tanh(c_new)
        return (h_new, c_new), None

    h0 = jnp.zeros((B, H), jnp.float32)
    c0 = jnp.zeros((B, H), jnp.float32)
    (h_final, _), _ = lax.scan(step, (h0, c0), jnp.transpose(x, (1, 0, 2)))
    return h_final


if __name__ == "__main__":
    input_size = 4
    hidden_size = 64
    batch = 2
    seq_len = 8

    key = jax.random.PRNGKey(0)
    k_x, k1, k2, k3, k4 = jax.random.split(key, 5)

    # Deterministic parameter init mimicking PyTorch LSTM: U(-1/sqrt(H), 1/sqrt(H)).
    k_bound = 1.0 / jnp.sqrt(jnp.float32(hidden_size))
    w_ih = jax.random.uniform(k1, (4 * hidden_size, input_size),
                              jnp.float32, -k_bound, k_bound)
    w_hh = jax.random.uniform(k2, (4 * hidden_size, hidden_size),
                              jnp.float32, -k_bound, k_bound)
    b_ih = jax.random.uniform(k3, (4 * hidden_size,),
                              jnp.float32, -k_bound, k_bound)
    b_hh = jax.random.uniform(k4, (4 * hidden_size,),
                              jnp.float32, -k_bound, k_bound)

    x = jax.random.normal(k_x, (batch, seq_len, input_size), jnp.float32)

    h_kernel = jax.block_until_ready(lstm_encoder(x, w_ih, w_hh, b_ih, b_hh))
    h_ref = jax.block_until_ready(_lstm_reference(x, w_ih, w_hh, b_ih, b_hh))

    assert h_kernel.shape == (batch, hidden_size)
    # bf16 recurrent matmul operands -> loosened tolerance vs. f32 reference.
    assert jnp.allclose(h_kernel, h_ref, atol=2e-2, rtol=2e-2)
    print("KERNEL_OK")
</pallas_src>

<mosaic_0001>
module attributes {stable_mosaic.version = 11 : i64} {
  func.func @_lstm_recurrence_kernel(%arg0: i32, %arg1: memref<8x2x512xf32, #tpu.memory_space<vmem>>, %arg2: memref<128x512xbf16, #tpu.memory_space<vmem>>, %arg3: memref<2x128xf32, #tpu.memory_space<vmem>>) attributes {dimension_semantics = [#tpu.dimension_semantics<parallel>], iteration_bounds = array<i64: 1>, scalar_prefetch = 0 : i64, scratch_operands = 0 : i64, tpu.core_type = #tpu.core_type<tc>, window_params = [{transform_indices = @transform_0, window_bounds = array<i64: 8, 2, 512>}, {pipeline_mode = #tpu.pipeline_mode<synchronous>, transform_indices = @transform_1, window_bounds = array<i64: 128, 512>}, {transform_indices = @transform_2, window_bounds = array<i64: 2, 128>}]} {
    %c0 = arith.constant 0 : index
    %c0_0 = arith.constant 0 : index
    %0 = vector.load %arg2[%c0, %c0_0] : memref<128x512xbf16, #tpu.memory_space<vmem>>, vector<128x512xbf16>
    %cst = arith.constant 0.000000e+00 : f32
    %1 = vector.broadcast %cst : f32 to vector<2x128xf32>
    %cst_1 = arith.constant 0.000000e+00 : f32
    %2 = vector.broadcast %cst_1 : f32 to vector<2x128xf32>
    %c0_i32 = arith.constant 0 : i32
    %3 = arith.index_cast %c0_i32 : i32 to index
    %c0_2 = arith.constant 0 : index
    %c0_3 = arith.constant 0 : index
    %4 = vector.load %arg1[%3, %c0_2, %c0_3] : memref<8x2x512xf32, #tpu.memory_space<vmem>>, vector<1x2x512xf32>
    %5 = vector.shape_cast %4 : vector<1x2x512xf32> to vector<2x512xf32>
    %6 = arith.truncf %1 : vector<2x128xf32> to vector<2x128xbf16>
    %cst_4 = arith.constant dense<0.000000e+00> : vector<2x512xf32>
    %7 = tpu.matmul %6, %0, %cst_4 {dimension_numbers = #tpu.dot_dimension_numbers<[1], [0], [0], [1], [0, 0, 1, 1], [], []>} : vector<2x128xbf16>, vector<128x512xbf16>, vector<2x512xf32> -> vector<2x512xf32>
    %8 = arith.addf %5, %7 : vector<2x512xf32>
    %9 = vector.extract_strided_slice %8 {offsets = [0, 0], sizes = [2, 384], strides = [1, 1]} : vector<2x512xf32> to vector<2x384xf32>
    %10 = arith.negf %9 : vector<2x384xf32>
    %11 = math.exp %10 : vector<2x384xf32>
    %cst_5 = arith.constant 1.000000e+00 : f32
    %12 = vector.broadcast %cst_5 : f32 to vector<2x384xf32>
    %13 = arith.addf %12, %11 : vector<2x384xf32>
    %14 = arith.divf %12, %13 : vector<2x384xf32>
    %15 = vector.extract_strided_slice %8 {offsets = [0, 384], sizes = [2, 128], strides = [1, 1]} : vector<2x512xf32> to vector<2x128xf32>
    %16 = math.tanh %15 : vector<2x128xf32>
    %17 = vector.extract_strided_slice %14 {offsets = [0, 0], sizes = [2, 128], strides = [1, 1]} : vector<2x384xf32> to vector<2x128xf32>
    %18 = vector.extract_strided_slice %14 {offsets = [0, 128], sizes = [2, 128], strides = [1, 1]} : vector<2x384xf32> to vector<2x128xf32>
    %19 = vector.extract_strided_slice %14 {offsets = [0, 256], sizes = [2, 128], strides = [1, 1]} : vector<2x384xf32> to vector<2x128xf32>
    %20 = arith.mulf %18, %2 : vector<2x128xf32>
    %21 = arith.mulf %17, %16 : vector<2x128xf32>
    %22 = arith.addf %20, %21 : vector<2x128xf32>
    %23 = math.tanh %22 : vector<2x128xf32>
    %24 = arith.mulf %19, %23 : vector<2x128xf32>
    %c1_i32 = arith.constant 1 : i32
    %25 = arith.index_cast %c1_i32 : i32 to index
    %c0_6 = arith.constant 0 : index
    %c0_7 = arith.constant 0 : index
    %26 = vector.load %arg1[%25, %c0_6, %c0_7] : memref<8x2x512xf32, #tpu.memory_space<vmem>>, vector<1x2x512xf32>
    %27 = vector.shape_cast %26 : vector<1x2x512xf32> to vector<2x512xf32>
    %28 = arith.truncf %24 : vector<2x128xf32> to vector<2x128xbf16>
    %cst_8 = arith.constant dense<0.000000e+00> : vector<2x512xf32>
    %29 = tpu.matmul %28, %0, %cst_8 {dimension_numbers = #tpu.dot_dimension_numbers<[1], [0], [0], [1], [0, 0, 1, 1], [], []>} : vector<2x128xbf16>, vector<128x512xbf16>, vector<2x512xf32> -> vector<2x512xf32>
    %30 = arith.addf %27, %29 : vector<2x512xf32>
    %31 = vector.extract_strided_slice %30 {offsets = [0, 0], sizes = [2, 384], strides = [1, 1]} : vector<2x512xf32> to vector<2x384xf32>
    %32 = arith.negf %31 : vector<2x384xf32>
    %33 = math.exp %32 : vector<2x384xf32>
    %cst_9 = arith.constant 1.000000e+00 : f32
    %34 = vector.broadcast %cst_9 : f32 to vector<2x384xf32>
    %35 = arith.addf %34, %33 : vector<2x384xf32>
    %36 = arith.divf %34, %35 : vector<2x384xf32>
    %37 = vector.extract_strided_slice %30 {offsets = [0, 384], sizes = [2, 128], strides = [1, 1]} : vector<2x512xf32> to vector<2x128xf32>
    %38 = math.tanh %37 : vector<2x128xf32>
    %39 = vector.extract_strided_slice %36 {offsets = [0, 0], sizes = [2, 128], strides = [1, 1]} : vector<2x384xf32> to vector<2x128xf32>
    %40 = vector.extract_strided_slice %36 {offsets = [0, 128], sizes = [2, 128], strides = [1, 1]} : vector<2x384xf32> to vector<2x128xf32>
    %41 = vector.extract_strided_slice %36 {offsets = [0, 256], sizes = [2, 128], strides = [1, 1]} : vector<2x384xf32> to vector<2x128xf32>
    %42 = arith.mulf %40, %22 : vector<2x128xf32>
    %43 = arith.mulf %39, %38 : vector<2x128xf32>
    %44 = arith.addf %42, %43 : vector<2x128xf32>
    %45 = math.tanh %44 : vector<2x128xf32>
    %46 = arith.mulf %41, %45 : vector<2x128xf32>
    %c2_i32 = arith.constant 2 : i32
    %47 = arith.index_cast %c2_i32 : i32 to index
    %c0_10 = arith.constant 0 : index
    %c0_11 = arith.constant 0 : index
    %48 = vector.load %arg1[%47, %c0_10, %c0_11] : memref<8x2x512xf32, #tpu.memory_space<vmem>>, vector<1x2x512xf32>
    %49 = vector.shape_cast %48 : vector<1x2x512xf32> to vector<2x512xf32>
    %50 = arith.truncf %46 : vector<2x128xf32> to vector<2x128xbf16>
    %cst_12 = arith.constant dense<0.000000e+00> : vector<2x512xf32>
    %51 = tpu.matmul %50, %0, %cst_12 {dimension_numbers = #tpu.dot_dimension_numbers<[1], [0], [0], [1], [0, 0, 1, 1], [], []>} : vector<2x128xbf16>, vector<128x512xbf16>, vector<2x512xf32> -> vector<2x512xf32>
    %52 = arith.addf %49, %51 : vector<2x512xf32>
    %53 = vector.extract_strided_slice %52 {offsets = [0, 0], sizes = [2, 384], strides = [1, 1]} : vector<2x512xf32> to vector<2x384xf32>
    %54 = arith.negf %53 : vector<2x384xf32>
    %55 = math.exp %54 : vector<2x384xf32>
    %cst_13 = arith.constant 1.000000e+00 : f32
    %56 = vector.broadcast %cst_13 : f32 to vector<2x384xf32>
    %57 = arith.addf %56, %55 : vector<2x384xf32>
    %58 = arith.divf %56, %57 : vector<2x384xf32>
    %59 = vector.extract_strided_slice %52 {offsets = [0, 384], sizes = [2, 128], strides = [1, 1]} : vector<2x512xf32> to vector<2x128xf32>
    %60 = math.tanh %59 : vector<2x128xf32>
    %61 = vector.extract_strided_slice %58 {offsets = [0, 0], sizes = [2, 128], strides = [1, 1]} : vector<2x384xf32> to vector<2x128xf32>
    %62 = vector.extract_strided_slice %58 {offsets = [0, 128], sizes = [2, 128], strides = [1, 1]} : vector<2x384xf32> to vector<2x128xf32>
    %63 = vector.extract_strided_slice %58 {offsets = [0, 256], sizes = [2, 128], strides = [1, 1]} : vector<2x384xf32> to vector<2x128xf32>
    %64 = arith.mulf %62, %44 : vector<2x128xf32>
    %65 = arith.mulf %61, %60 : vector<2x128xf32>
    %66 = arith.addf %64, %65 : vector<2x128xf32>
    %67 = math.tanh %66 : vector<2x128xf32>
    %68 = arith.mulf %63, %67 : vector<2x128xf32>
    %c3_i32 = arith.constant 3 : i32
    %69 = arith.index_cast %c3_i32 : i32 to index
    %c0_14 = arith.constant 0 : index
    %c0_15 = arith.constant 0 : index
    %70 = vector.load %arg1[%69, %c0_14, %c0_15] : memref<8x2x512xf32, #tpu.memory_space<vmem>>, vector<1x2x512xf32>
    %71 = vector.shape_cast %70 : vector<1x2x512xf32> to vector<2x512xf32>
    %72 = arith.truncf %68 : vector<2x128xf32> to vector<2x128xbf16>
    %cst_16 = arith.constant dense<0.000000e+00> : vector<2x512xf32>
    %73 = tpu.matmul %72, %0, %cst_16 {dimension_numbers = #tpu.dot_dimension_numbers<[1], [0], [0], [1], [0, 0, 1, 1], [], []>} : vector<2x128xbf16>, vector<128x512xbf16>, vector<2x512xf32> -> vector<2x512xf32>
    %74 = arith.addf %71, %73 : vector<2x512xf32>
    %75 = vector.extract_strided_slice %74 {offsets = [0, 0], sizes = [2, 384], strides = [1, 1]} : vector<2x512xf32> to vector<2x384xf32>
    %76 = arith.negf %75 : vector<2x384xf32>
    %77 = math.exp %76 : vector<2x384xf32>
    %cst_17 = arith.constant 1.000000e+00 : f32
    %78 = vector.broadcast %cst_17 : f32 to vector<2x384xf32>
    %79 = arith.addf %78, %77 : vector<2x384xf32>
    %80 = arith.divf %78, %79 : vector<2x384xf32>
    %81 = vector.extract_strided_slice %74 {offsets = [0, 384], sizes = [2, 128], strides = [1, 1]} : vector<2x512xf32> to vector<2x128xf32>
    %82 = math.tanh %81 : vector<2x128xf32>
    %83 = vector.extract_strided_slice %80 {offsets = [0, 0], sizes = [2, 128], strides = [1, 1]} : vector<2x384xf32> to vector<2x128xf32>
    %84 = vector.extract_strided_slice %80 {offsets = [0, 128], sizes = [2, 128], strides = [1, 1]} : vector<2x384xf32> to vector<2x128xf32>
    %85 = vector.extract_strided_slice %80 {offsets = [0, 256], sizes = [2, 128], strides = [1, 1]} : vector<2x384xf32> to vector<2x128xf32>
    %86 = arith.mulf %84, %66 : vector<2x128xf32>
    %87 = arith.mulf %83, %82 : vector<2x128xf32>
    %88 = arith.addf %86, %87 : vector<2x128xf32>
    %89 = math.tanh %88 : vector<2x128xf32>
    %90 = arith.mulf %85, %89 : vector<2x128xf32>
    %c4_i32 = arith.constant 4 : i32
    %91 = arith.index_cast %c4_i32 : i32 to index
    %c0_18 = arith.constant 0 : index
    %c0_19 = arith.constant 0 : index
    %92 = vector.load %arg1[%91, %c0_18, %c0_19] : memref<8x2x512xf32, #tpu.memory_space<vmem>>, vector<1x2x512xf32>
    %93 = vector.shape_cast %92 : vector<1x2x512xf32> to vector<2x512xf32>
    %94 = arith.truncf %90 : vector<2x128xf32> to vector<2x128xbf16>
    %cst_20 = arith.constant dense<0.000000e+00> : vector<2x512xf32>
    %95 = tpu.matmul %94, %0, %cst_20 {dimension_numbers = #tpu.dot_dimension_numbers<[1], [0], [0], [1], [0, 0, 1, 1], [], []>} : vector<2x128xbf16>, vector<128x512xbf16>, vector<2x512xf32> -> vector<2x512xf32>
    %96 = arith.addf %93, %95 : vector<2x512xf32>
    %97 = vector.extract_strided_slice %96 {offsets = [0, 0], sizes = [2, 384], strides = [1, 1]} : vector<2x512xf32> to vector<2x384xf32>
    %98 = arith.negf %97 : vector<2x384xf32>
    %99 = math.exp %98 : vector<2x384xf32>
    %cst_21 = arith.constant 1.000000e+00 : f32
    %100 = vector.broadcast %cst_21 : f32 to vector<2x384xf32>
    %101 = arith.addf %100, %99 : vector<2x384xf32>
    %102 = arith.divf %100, %101 : vector<2x384xf32>
    %103 = vector.extract_strided_slice %96 {offsets = [0, 384], sizes = [2, 128], strides = [1, 1]} : vector<2x512xf32> to vector<2x128xf32>
    %104 = math.tanh %103 : vector<2x128xf32>
    %105 = vector.extract_strided_slice %102 {offsets = [0, 0], sizes = [2, 128], strides = [1, 1]} : vector<2x384xf32> to vector<2x128xf32>
    %106 = vector.extract_strided_slice %102 {offsets = [0, 128], sizes = [2, 128], strides = [1, 1]} : vector<2x384xf32> to vector<2x128xf32>
    %107 = vector.extract_strided_slice %102 {offsets = [0, 256], sizes = [2, 128], strides = [1, 1]} : vector<2x384xf32> to vector<2x128xf32>
    %108 = arith.mulf %106, %88 : vector<2x128xf32>
    %109 = arith.mulf %105, %104 : vector<2x128xf32>
    %110 = arith.addf %108, %109 : vector<2x128xf32>
    %111 = math.tanh %110 : vector<2x128xf32>
    %112 = arith.mulf %107, %111 : vector<2x128xf32>
    %c5_i32 = arith.constant 5 : i32
    %113 = arith.index_cast %c5_i32 : i32 to index
    %c0_22 = arith.constant 0 : index
    %c0_23 = arith.constant 0 : index
    %114 = vector.load %arg1[%113, %c0_22, %c0_23] : memref<8x2x512xf32, #tpu.memory_space<vmem>>, vector<1x2x512xf32>
    %115 = vector.shape_cast %114 : vector<1x2x512xf32> to vector<2x512xf32>
    %116 = arith.truncf %112 : vector<2x128xf32> to vector<2x128xbf16>
    %cst_24 = arith.constant dense<0.000000e+00> : vector<2x512xf32>
    %117 = tpu.matmul %116, %0, %cst_24 {dimension_numbers = #tpu.dot_dimension_numbers<[1], [0], [0], [1], [0, 0, 1, 1], [], []>} : vector<2x128xbf16>, vector<128x512xbf16>, vector<2x512xf32> -> vector<2x512xf32>
    %118 = arith.addf %115, %117 : vector<2x512xf32>
    %119 = vector.extract_strided_slice %118 {offsets = [0, 0], sizes = [2, 384], strides = [1, 1]} : vector<2x512xf32> to vector<2x384xf32>
    %120 = arith.negf %119 : vector<2x384xf32>
    %121 = math.exp %120 : vector<2x384xf32>
    %cst_25 = arith.constant 1.000000e+00 : f32
    %122 = vector.broadcast %cst_25 : f32 to vector<2x384xf32>
    %123 = arith.addf %122, %121 : vector<2x384xf32>
    %124 = arith.divf %122, %123 : vector<2x384xf32>
    %125 = vector.extract_strided_slice %118 {offsets = [0, 384], sizes = [2, 128], strides = [1, 1]} : vector<2x512xf32> to vector<2x128xf32>
    %126 = math.tanh %125 : vector<2x128xf32>
    %127 = vector.extract_strided_slice %124 {offsets = [0, 0], sizes = [2, 128], strides = [1, 1]} : vector<2x384xf32> to vector<2x128xf32>
    %128 = vector.extract_strided_slice %124 {offsets = [0, 128], sizes = [2, 128], strides = [1, 1]} : vector<2x384xf32> to vector<2x128xf32>
    %129 = vector.extract_strided_slice %124 {offsets = [0, 256], sizes = [2, 128], strides = [1, 1]} : vector<2x384xf32> to vector<2x128xf32>
    %130 = arith.mulf %128, %110 : vector<2x128xf32>
    %131 = arith.mulf %127, %126 : vector<2x128xf32>
    %132 = arith.addf %130, %131 : vector<2x128xf32>
    %133 = math.tanh %132 : vector<2x128xf32>
    %134 = arith.mulf %129, %133 : vector<2x128xf32>
    %c6_i32 = arith.constant 6 : i32
    %135 = arith.index_cast %c6_i32 : i32 to index
    %c0_26 = arith.constant 0 : index
    %c0_27 = arith.constant 0 : index
    %136 = vector.load %arg1[%135, %c0_26, %c0_27] : memref<8x2x512xf32, #tpu.memory_space<vmem>>, vector<1x2x512xf32>
    %137 = vector.shape_cast %136 : vector<1x2x512xf32> to vector<2x512xf32>
    %138 = arith.truncf %134 : vector<2x128xf32> to vector<2x128xbf16>
    %cst_28 = arith.constant dense<0.000000e+00> : vector<2x512xf32>
    %139 = tpu.matmul %138, %0, %cst_28 {dimension_numbers = #tpu.dot_dimension_numbers<[1], [0], [0], [1], [0, 0, 1, 1], [], []>} : vector<2x128xbf16>, vector<128x512xbf16>, vector<2x512xf32> -> vector<2x512xf32>
    %140 = arith.addf %137, %139 : vector<2x512xf32>
    %141 = vector.extract_strided_slice %140 {offsets = [0, 0], sizes = [2, 384], strides = [1, 1]} : vector<2x512xf32> to vector<2x384xf32>
    %142 = arith.negf %141 : vector<2x384xf32>
    %143 = math.exp %142 : vector<2x384xf32>
    %cst_29 = arith.constant 1.000000e+00 : f32
    %144 = vector.broadcast %cst_29 : f32 to vector<2x384xf32>
    %145 = arith.addf %144, %143 : vector<2x384xf32>
    %146 = arith.divf %144, %145 : vector<2x384xf32>
    %147 = vector.extract_strided_slice %140 {offsets = [0, 384], sizes = [2, 128], strides = [1, 1]} : vector<2x512xf32> to vector<2x128xf32>
    %148 = math.tanh %147 : vector<2x128xf32>
    %149 = vector.extract_strided_slice %146 {offsets = [0, 0], sizes = [2, 128], strides = [1, 1]} : vector<2x384xf32> to vector<2x128xf32>
    %150 = vector.extract_strided_slice %146 {offsets = [0, 128], sizes = [2, 128], strides = [1, 1]} : vector<2x384xf32> to vector<2x128xf32>
    %151 = vector.extract_strided_slice %146 {offsets = [0, 256], sizes = [2, 128], strides = [1, 1]} : vector<2x384xf32> to vector<2x128xf32>
    %152 = arith.mulf %150, %132 : vector<2x128xf32>
    %153 = arith.mulf %149, %148 : vector<2x128xf32>
    %154 = arith.addf %152, %153 : vector<2x128xf32>
    %155 = math.tanh %154 : vector<2x128xf32>
    %156 = arith.mulf %151, %155 : vector<2x128xf32>
    %c7_i32 = arith.constant 7 : i32
    %157 = arith.index_cast %c7_i32 : i32 to index
    %c0_30 = arith.constant 0 : index
    %c0_31 = arith.constant 0 : index
    %158 = vector.load %arg1[%157, %c0_30, %c0_31] : memref<8x2x512xf32, #tpu.memory_space<vmem>>, vector<1x2x512xf32>
    %159 = vector.shape_cast %158 : vector<1x2x512xf32> to vector<2x512xf32>
    %160 = arith.truncf %156 : vector<2x128xf32> to vector<2x128xbf16>
    %cst_32 = arith.constant dense<0.000000e+00> : vector<2x512xf32>
    %161 = tpu.matmul %160, %0, %cst_32 {dimension_numbers = #tpu.dot_dimension_numbers<[1], [0], [0], [1], [0, 0, 1, 1], [], []>} : vector<2x128xbf16>, vector<128x512xbf16>, vector<2x512xf32> -> vector<2x512xf32>
    %162 = arith.addf %159, %161 : vector<2x512xf32>
    %163 = vector.extract_strided_slice %162 {offsets = [0, 0], sizes = [2, 384], strides = [1, 1]} : vector<2x512xf32> to vector<2x384xf32>
    %164 = arith.negf %163 : vector<2x384xf32>
    %165 = math.exp %164 : vector<2x384xf32>
    %cst_33 = arith.constant 1.000000e+00 : f32
    %166 = vector.broadcast %cst_33 : f32 to vector<2x384xf32>
    %167 = arith.addf %166, %165 : vector<2x384xf32>
    %168 = arith.divf %166, %167 : vector<2x384xf32>
    %169 = vector.extract_strided_slice %162 {offsets = [0, 384], sizes = [2, 128], strides = [1, 1]} : vector<2x512xf32> to vector<2x128xf32>
    %170 = math.tanh %169 : vector<2x128xf32>
    %171 = vector.extract_strided_slice %168 {offsets = [0, 0], sizes = [2, 128], strides = [1, 1]} : vector<2x384xf32> to vector<2x128xf32>
    %172 = vector.extract_strided_slice %168 {offsets = [0, 128], sizes = [2, 128], strides = [1, 1]} : vector<2x384xf32> to vector<2x128xf32>
    %173 = vector.extract_strided_slice %168 {offsets = [0, 256], sizes = [2, 128], strides = [1, 1]} : vector<2x384xf32> to vector<2x128xf32>
    %174 = arith.mulf %172, %154 : vector<2x128xf32>
    %175 = arith.mulf %171, %170 : vector<2x128xf32>
    %176 = arith.addf %174, %175 : vector<2x128xf32>
    %177 = math.tanh %176 : vector<2x128xf32>
    %178 = arith.mulf %173, %177 : vector<2x128xf32>
    %c8_i32 = arith.constant 8 : i32
    %c0_34 = arith.constant 0 : index
    %c0_35 = arith.constant 0 : index
    %179 = vector.load %arg3[%c0_34, %c0_35] : memref<2x128xf32, #tpu.memory_space<vmem>>, vector<2x128xf32>
    tpu.vector_store %arg3[%c0_34, %c0_35], %178 {strides = array<i32>} : memref<2x128xf32, #tpu.memory_space<vmem>>, vector<2x128xf32>,
    return
  }
  func.func @transform_0(%arg0: i32) -> (i32, i32, i32) {
    %c0_i32 = arith.constant 0 : i32
    %c0_i32_0 = arith.constant 0 : i32
    %c0_i32_1 = arith.constant 0 : i32
    return %c0_i32, %arg0, %c0_i32_0 : i32, i32, i32
  }
  func.func @transform_1(%arg0: i32) -> (i32, i32) {
    %c0_i32 = arith.constant 0 : i32
    %c0_i32_0 = arith.constant 0 : i32
    %c0_i32_1 = arith.constant 0 : i32
    return %c0_i32, %c0_i32_0 : i32, i32
  }
  func.func @transform_2(%arg0: i32) -> (i32, i32) {
    %c0_i32 = arith.constant 0 : i32
    %c0_i32_0 = arith.constant 0 : i32
    return %arg0, %c0_i32 : i32, i32
  }
}

</mosaic_0001>

<llo_original>
// kernel: tpu_custom_call.1
$region0: #{tpu_custom_call.1}
  #allocation0 [shape = 'u32[]', space=smem, size = 0x4, offset = 0x4, fixed_abs, tag = 'smem constant byte address 0x4 - core index']
  #allocation1 [shape = 'u32[144,128]{1,0:T(1,128)}', space=vmem, size = 0x12000, scoped, tag = 'internal scratch']
  %s0 = inlined_call_operand.hbm [shape: f32[8,2,512], index: 0, kind: input, shape index: {}]
  %s1 = inlined_call_operand.hbm [shape: bf16[128,512], index: 1, kind: input, shape index: {}]
  %s2 = inlined_call_operand.hbm [shape: f32[2,128], index: 2, kind: output, shape index: {}]
  %s3 = sld [smem:[#allocation0]]
  $region26: #{tpu_custom_call.1} parent=0
    _
  %s5 = ssub.s32 1, %s3
  %s6 = scalar_select 0, %s5, %s3
  $region1: #{tpu_custom_call.1} parent=0
    #allocation2 [shape = 'u8[32768]{0}', space=vmem, size = 0x8000, scoped, tag = 'input window, operand 0, single buffered']
    #allocation3 [shape = 's32[1]{0}', space=sflag, size = 0x4, scoped, tag = 'scoped memory for tpu_custom_call.1']
    #allocation4 [shape = 's32[1]{0}', space=sflag, size = 0x4, scoped, tag = 'scoped memory for tpu_custom_call.1']
    #allocation5 [shape = 'u8[131072]{0}', space=vmem, size = 0x20000, scoped, tag = 'input window, operand 1, single buffered']
    #allocation6 [shape = 's32[1]{0}', space=sflag, size = 0x4, scoped, tag = 'scoped memory for tpu_custom_call.1']
    #allocation7 [shape = 'u8[1024]{0}', space=vmem, size = 0x400, scoped, tag = 'output window, operand 0, single buffered']
    %7 = vsyncpa [#allocation3], 0
    %8 = vsyncpa [#allocation6], 0
    %9 = vsyncpa [#allocation4], 0
    // Predicated region
    $region2: #{tpu_custom_call.1} parent=1 // pred_check
      _
    $region3: #{tpu_custom_call.1} parent=1 // pred_check_branch
      %11 = sbr.rel (0) target = $region5
    $region4: #{tpu_custom_call.1} parent=1 // pred_region
      %s13 = ssub.s32 1024, 1024
      %14 = vsyncadd [#allocation3], %s13
      %s15 = sshll.u32 [#allocation2], 4
      %s16 = int_to_ptr.vmem [resolvable:$true] %s15
      %21 = dma.hbm_to_vmem [thread:$0]  %s0, 1024, %s16, [#allocation3], 128, 128, 8
    $region5: #{tpu_custom_call.1} parent=1 // pred_fallthru
      _
    // Predicated region
    $region6: #{tpu_custom_call.1} parent=1 // pred_check
      _
    $region7: #{tpu_custom_call.1} parent=1 // pred_check_branch
      %23 = sbr.rel (0) target = $region9
    $region8: #{tpu_custom_call.1} parent=1 // pred_region
      %s25 = ssub.s32 4096, 4096
      %26 = vsyncadd [#allocation6], %s25
      %s27 = sshll.u32 [#allocation5], 4
      %s28 = int_to_ptr.vmem [resolvable:$true] %s27
      %33 = dma.hbm_to_vmem [thread:$0]  %s1, 4096, %s28, [#allocation6], 256, 256, 16
    $region9: #{tpu_custom_call.1} parent=1 // pred_fallthru
      _
    // Predicated region
    $region10: #{tpu_custom_call.1} parent=1 // pred_check
      _
    $region11: #{tpu_custom_call.1} parent=1 // pred_check_branch
      %35 = sbr.rel (0) target = $region13
    $region12: #{tpu_custom_call.1} parent=1 // pred_region
      %36 = dma.done [#allocation3], 1024
    $region13: #{tpu_custom_call.1} parent=1 // pred_fallthru
      _
    // Predicated region
    $region14: #{tpu_custom_call.1} parent=1 // pred_check
      _
    $region15: #{tpu_custom_call.1} parent=1 // pred_check_branch
      %38 = sbr.rel (0) target = $region17
    $region16: #{tpu_custom_call.1} parent=1 // pred_region
      %39 = dma.done [#allocation6], 4096
    $region17: #{tpu_custom_call.1} parent=1 // pred_fallthru
      _
    %v41 = vld [vmem:[#allocation5] sm:$0xff]
    %v42 = vld [vmem:[#allocation5 + $0x8] sm:$0xff]
    %v43 = vld [vmem:[#allocation5 + $0x10] sm:$0xff]
    %v44 = vld [vmem:[#allocation5 + $0x18] sm:$0xff]
    %v45 = vld [vmem:[#allocation5 + $0x20] sm:$0xff]
    %v46 = vld [vmem:[#allocation5 + $0x28] sm:$0xff]
    %v47 = vld [vmem:[#allocation5 + $0x30] sm:$0xff]
    %v48 = vld [vmem:[#allocation5 + $0x38] sm:$0xff]
    %v49 = vld [vmem:[#allocation5 + $0x40] sm:$0xff]
    %v50 = vld [vmem:[#allocation5 + $0x48] sm:$0xff]
    %v51 = vld [vmem:[#allocation5 + $0x50] sm:$0xff]
    %v52 = vld [vmem:[#allocation5 + $0x58] sm:$0xff]
    %v53 = vld [vmem:[#allocation5 + $0x60] sm:$0xff]
    %v54 = vld [vmem:[#allocation5 + $0x68] sm:$0xff]
    %v55 = vld [vmem:[#allocation5 + $0x70] sm:$0xff]
    %v56 = vld [vmem:[#allocation5 + $0x78] sm:$0xff]
    %v57 = vld [vmem:[#allocation5 + $0x80] sm:$0xff]
    %v58 = vld [vmem:[#allocation5 + $0x88] sm:$0xff]
    %v59 = vld [vmem:[#allocation5 + $0x90] sm:$0xff]
    %v60 = vld [vmem:[#allocation5 + $0x98] sm:$0xff]
    %v61 = vld [vmem:[#allocation5 + $0xa0] sm:$0xff]
    %v62 = vld [vmem:[#allocation5 + $0xa8] sm:$0xff]
    %v63 = vld [vmem:[#allocation5 + $0xb0] sm:$0xff]
    %v64 = vld [vmem:[#allocation5 + $0xb8] sm:$0xff]
    %v65 = vld [vmem:[#allocation5 + $0xc0] sm:$0xff]
    %v66 = vld [vmem:[#allocation5 + $0xc8] sm:$0xff]
    %v67 = vld [vmem:[#allocation5 + $0xd0] sm:$0xff]
    %v68 = vld [vmem:[#allocation5 + $0xd8] sm:$0xff]
    %v69 = vld [vmem:[#allocation5 + $0xe0] sm:$0xff]
    %v70 = vld [vmem:[#allocation5 + $0xe8] sm:$0xff]
    %v71 = vld [vmem:[#allocation5 + $0xf0] sm:$0xff]
    %v72 = vld [vmem:[#allocation5 + $0xf8] sm:$0xff]
    %v73 = vld [vmem:[#allocation2] sm:$0xff]
    %v106 = vunpack.c.l.b16 %v41
    %v107 = vunpack.c.h.b16 %v41
    %v108 = vunpack.c.l.b16 %v42
    %v109 = vunpack.c.h.b16 %v42
    %v110 = vunpack.c.l.b16 %v43
    %v111 = vunpack.c.h.b16 %v43
    %v112 = vunpack.c.l.b16 %v44
    %v113 = vunpack.c.h.b16 %v44
    %v114 = vunpack.c.l.b16 %v45
    %v115 = vunpack.c.h.b16 %v45
    %v116 = vunpack.c.l.b16 %v46
    %v117 = vunpack.c.h.b16 %v46
    %v118 = vunpack.c.l.b16 %v47
    %v119 = vunpack.c.h.b16 %v47
    %v120 = vunpack.c.l.b16 %v48
    %v121 = vunpack.c.h.b16 %v48
    %v122 = vunpack.c.l.b16 %v49
    %v123 = vunpack.c.h.b16 %v49
    %v124 = vunpack.c.l.b16 %v50
    %v125 = vunpack.c.h.b16 %v50
    %v126 = vunpack.c.l.b16 %v51
    %v127 = vunpack.c.h.b16 %v51
    %v128 = vunpack.c.l.b16 %v52
    %v129 = vunpack.c.h.b16 %v52
    %v130 = vunpack.c.l.b16 %v53
    %v131 = vunpack.c.h.b16 %v53
    %v132 = vunpack.c.l.b16 %v54
    %v133 = vunpack.c.h.b16 %v54
    %v134 = vunpack.c.l.b16 %v55
    %v135 = vunpack.c.h.b16 %v55
    %v136 = vunpack.c.l.b16 %v56
    %v137 = vunpack.c.h.b16 %v56
    %v138 = vunpack.c.l.b16 %v57
    %v139 = vunpack.c.h.b16 %v57
    %v140 = vunpack.c.l.b16 %v58
    %v141 = vunpack.c.h.b16 %v58
    %v142 = vunpack.c.l.b16 %v59
    %v143 = vunpack.c.h.b16 %v59
    %v144 = vunpack.c.l.b16 %v60
    %v145 = vunpack.c.h.b16 %v60
    %v146 = vunpack.c.l.b16 %v61
    %v147 = vunpack.c.h.b16 %v61
    %v148 = vunpack.c.l.b16 %v62
    %v149 = vunpack.c.h.b16 %v62
    %v150 = vunpack.c.l.b16 %v63
    %v151 = vunpack.c.h.b16 %v63
    %v152 = vunpack.c.l.b16 %v64
    %v153 = vunpack.c.h.b16 %v64
    %v154 = vunpack.c.l.b16 %v65
    %v155 = vunpack.c.h.b16 %v65
    %v156 = vunpack.c.l.b16 %v66
    %v157 = vunpack.c.h.b16 %v66
    %v158 = vunpack.c.l.b16 %v67
    %v159 = vunpack.c.h.b16 %v67
    %v160 = vunpack.c.l.b16 %v68
    %v161 = vunpack.c.h.b16 %v68
    %v162 = vunpack.c.l.b16 %v69
    %v163 = vunpack.c.h.b16 %v69
    %v164 = vunpack.c.l.b16 %v70
    %v165 = vunpack.c.h.b16 %v70
    %v166 = vunpack.c.l.b16 %v71
    %v167 = vunpack.c.h.b16 %v71
    %v168 = vunpack.c.l.b16 %v72
    %v169 = vunpack.c.h.b16 %v72
    %v170 = vpack.c.b16 %v110, %v106
    %v171 = vpack.c.b16 %v111, %v107
    %v172 = vpack.c.b16 %v112, %v108
    %v173 = vpack.c.b16 %v113, %v109
    %v174 = vpack.c.b16 %v118, %v114
    %v175 = vpack.c.b16 %v119, %v115
    %v176 = vpack.c.b16 %v120, %v116
    %v177 = vpack.c.b16 %v121, %v117
    %v178 = vpack.c.b16 %v126, %v122
    %v179 = vpack.c.b16 %v127, %v123
    %v180 = vpack.c.b16 %v128, %v124
    %v181 = vpack.c.b16 %v129, %v125
    %v182 = vpack.c.b16 %v134, %v130
    %v183 = vpack.c.b16 %v135, %v131
    %v184 = vpack.c.b16 %v136, %v132
    %v185 = vpack.c.b16 %v137, %v133
    %v186 = vpack.c.b16 %v142, %v138
    %v187 = vpack.c.b16 %v143, %v139
    %v188 = vpack.c.b16 %v144, %v140
    %v189 = vpack.c.b16 %v145, %v141
    %v190 = vpack.c.b16 %v150, %v146
    %v191 = vpack.c.b16 %v151, %v147
    %v192 = vpack.c.b16 %v152, %v148
    %v193 = vpack.c.b16 %v153, %v149
    %v194 = vpack.c.b16 %v158, %v154
    %v195 = vpack.c.b16 %v159, %v155
    %v196 = vpack.c.b16 %v160, %v156
    %v197 = vpack.c.b16 %v161, %v157
    %v198 = vpack.c.b16 %v166, %v162
    %v199 = vpack.c.b16 %v167, %v163
    %v200 = vpack.c.b16 %v168, %v164
    %v201 = vpack.c.b16 %v169, %v165
    %234 = vmatprep.subr.bf16.mxu0 %v171
    %235 = vmatpush1.bf16.msra.mxu0 %v170
    %236 = vmatprep.subr.bf16.mxu0 %v175
    %237 = vmatpush1.bf16.msra.mxu0 %v174
    %238 = vmatprep.subr.bf16.mxu0 %v179
    %239 = vmatpush1.bf16.msra.mxu0 %v178
    %240 = vmatprep.subr.bf16.mxu0 %v183
    %241 = vmatpush1.bf16.msra.mxu0 %v182
    %242 = vmatprep.subr.bf16.mxu0 %v187
    %243 = vmatpush1.bf16.msra.mxu0 %v186
    %244 = vmatprep.subr.bf16.mxu0 %v191
    %245 = vmatpush1.bf16.msra.mxu0 %v190
    %246 = vmatprep.subr.bf16.mxu0 %v195
    %247 = vmatpush1.bf16.msra.mxu0 %v194
    %248 = vmatprep.subr.bf16.mxu0 %v199
    %249 = vmatpush1.bf16.msra.mxu0 %v198
    %250 = vmatprep.subr.bf16.mxu0 0
    %251 = vmatpush1.bf16.msra.mxu0 0
    %252 = vmatprep.subr.bf16.mxu0 0
    %253 = vmatpush1.bf16.msra.mxu0 0
    %254 = vmatprep.subr.bf16.mxu0 0
    %255 = vmatpush1.bf16.msra.mxu0 0
    %256 = vmatprep.subr.bf16.mxu0 0
    %257 = vmatpush1.bf16.msra.mxu0 0
    %258 = vmatprep.subr.bf16.mxu0 0
    %259 = vmatpush1.bf16.msra.mxu0 0
    %260 = vmatprep.subr.bf16.mxu0 0
    %261 = vmatpush1.bf16.msra.mxu0 0
    %262 = vmatprep.subr.bf16.mxu0 0
    %263 = vmatpush1.bf16.msra.mxu0 0
    %264 = vmatprep.subr.bf16.mxu0 0
    %265 = vmatpush1.bf16.msra.mxu0 0
    %266 = vmatprep.mubr.bf16.mxu0 0
    %267 = vmatmul.mubr.bf16.gmra.mrb[0].mxu0 0
    %v268 = vpop.f32.mrb[0].mxu0
    %v269 = vadd.f32 0.0, %v268
    %v270 = vpop.f32.mrb[0].mxu0
    %v271 = vadd.f32 0.0, %v270
    %v272 = vpop.f32.mrb[0].mxu0
    %v273 = vpop.f32.mrb[0].mxu0
    %274 = vdwg.mxu0
    %275 = vmatprep.subr.bf16.mxu0 %v173
    %276 = vmatpush1.bf16.msra.mxu0 %v172
    %277 = vmatprep.subr.bf16.mxu0 %v177
    %278 = vmatpush1.bf16.msra.mxu0 %v176
    %279 = vmatprep.subr.bf16.mxu0 %v181
    %280 = vmatpush1.bf16.msra.mxu0 %v180
    %281 = vmatprep.subr.bf16.mxu0 %v185
    %282 = vmatpush1.bf16.msra.mxu0 %v184
    %283 = vmatprep.subr.bf16.mxu0 %v189
    %284 = vmatpush1.bf16.msra.mxu0 %v188
    %285 = vmatprep.subr.bf16.mxu0 %v193
    %286 = vmatpush1.bf16.msra.mxu0 %v192
    %287 = vmatprep.subr.bf16.mxu0 %v197
    %288 = vmatpush1.bf16.msra.mxu0 %v196
    %289 = vmatprep.subr.bf16.mxu0 %v201
    %290 = vmatpush1.bf16.msra.mxu0 %v200
    %291 = vmatprep.subr.bf16.mxu0 0
    %292 = vmatpush1.bf16.msra.mxu0 0
    %293 = vmatprep.subr.bf16.mxu0 0
    %294 = vmatpush1.bf16.msra.mxu0 0
    %295 = vmatprep.subr.bf16.mxu0 0
    %296 = vmatpush1.bf16.msra.mxu0 0
    %297 = vmatprep.subr.bf16.mxu0 0
    %298 = vmatpush1.bf16.msra.mxu0 0
    %299 = vmatprep.subr.bf16.mxu0 0
    %300 = vmatpush1.bf16.msra.mxu0 0
    %301 = vmatprep.subr.bf16.mxu0 0
    %302 = vmatpush1.bf16.msra.mxu0 0
    %303 = vmatprep.subr.bf16.mxu0 0
    %304 = vmatpush1.bf16.msra.mxu0 0
    %305 = vmatprep.subr.bf16.mxu0 0
    %306 = vmatpush1.bf16.msra.mxu0 0
    %307 = vmatprep.mubr.bf16.mxu0 0
    %308 = vmatmul.mubr.bf16.gmra.mrb[0].mxu0 0
    %v309 = vpop.f32.mrb[0].mxu0
    %v310 = vadd.f32 0.0, %v309
    %v311 = vpop.f32.mrb[0].mxu0
    %v312 = vadd.f32 0.0, %v311
    %v313 = vpop.f32.mrb[0].mxu0
    %v314 = vpop.f32.mrb[0].mxu0
    %315 = vdwg.mxu0
    %v320 = vcombine.low %v269, %v271
    %v321 = vcombine.low %v310, %v312
    %v323 = vunpack.c.l.s4 1983009808
    %v324 = vunpack.c.0.s8 %v323
    %v325 = vlaneseq
    %v326 = vshrl.u32 %v325, 7
    %v327 = vsub.s32 %v324, %v326
    %v328 = vrot.slane %v320, %v327
    %v330 = vunpack.c.l.s4 1983009808
    %v331 = vunpack.c.0.s8 %v330
    %v332 = vlaneseq
    %v333 = vshrl.u32 %v332, 7
    %v334 = vsub.s32 %v331, %v333
    %v335 = vrot.slane %v321, %v334
    %v336 = vcombine.low %v328, %v335
    %v338 = vadd.f32 %v73, %v336
    %v339 = vxor.u32 %v338, 2147483648
    %v340 = vmul.f32 %v339, 1.442695
    %v341 = vpow.pop %v340
    %v342 = vadd.f32 %v341, 1.0
    %v343 = vrcp.pop %v342
    %v344 = vmul.f32 1.0, %v343
    %v346 = vrot.slane %v338, 6
    %v348 = vtanh.pop %v346
    %v350 = vrot.slane %v344, 2
    %v352 = vmul.f32 %v350, 0.0
    %v353 = vmul.f32 %v344, %v348
    %v354 = vadd.f32 %v352, %v353
    %v355 = vtanh.pop %v354
    %v356 = vrot.slane %v344, 4
    %v358 = vmul.f32 %v356, %v355
    %s359 = scalar_lea.vmem [#allocation2], 8
    %v360 = vld [vmem:[%s359] sm:$0xff]
    %v361 = vpack.c.bf16 %v358, %v358
    %362 = vmatprep.subr.bf16.mxu0 %v171
    %363 = vmatpush1.bf16.msra.mxu0 %v170
    %364 = vmatprep.subr.bf16.mxu0 %v175
    %365 = vmatpush1.bf16.msra.mxu0 %v174
    %366 = vmatprep.subr.bf16.mxu0 %v179
    %367 = vmatpush1.bf16.msra.mxu0 %v178
    %368 = vmatprep.subr.bf16.mxu0 %v183
    %369 = vmatpush1.bf16.msra.mxu0 %v182
    %370 = vmatprep.subr.bf16.mxu0 %v187
    %371 = vmatpush1.bf16.msra.mxu0 %v186
    %372 = vmatprep.subr.bf16.mxu0 %v191
    %373 = vmatpush1.bf16.msra.mxu0 %v190
    %374 = vmatprep.subr.bf16.mxu0 %v195
    %375 = vmatpush1.bf16.msra.mxu0 %v194
    %376 = vmatprep.subr.bf16.mxu0 %v199
    %377 = vmatpush1.bf16.msra.mxu0 %v198
    %378 = vmatprep.subr.bf16.mxu0 0
    %379 = vmatpush1.bf16.msra.mxu0 0
    %380 = vmatprep.subr.bf16.mxu0 0
    %381 = vmatpush1.bf16.msra.mxu0 0
    %382 = vmatprep.subr.bf16.mxu0 0
    %383 = vmatpush1.bf16.msra.mxu0 0
    %384 = vmatprep.subr.bf16.mxu0 0
    %385 = vmatpush1.bf16.msra.mxu0 0
    %386 = vmatprep.subr.bf16.mxu0 0
    %387 = vmatpush1.bf16.msra.mxu0 0
    %388 = vmatprep.subr.bf16.mxu0 0
    %389 = vmatpush1.bf16.msra.mxu0 0
    %390 = vmatprep.subr.bf16.mxu0 0
    %391 = vmatpush1.bf16.msra.mxu0 0
    %392 = vmatprep.subr.bf16.mxu0 0
    %393 = vmatpush1.bf16.msra.mxu0 0
    %394 = vmatprep.mubr.bf16.mxu0 0
    %395 = vmatmul.mubr.bf16.gmra.mrb[0].mxu0 %v361
    %v396 = vpop.f32.mrb[0].mxu0
    %v397 = vadd.f32 0.0, %v396
    %v398 = vpop.f32.mrb[0].mxu0
    %v399 = vadd.f32 0.0, %v398
    %v400 = vpop.f32.mrb[0].mxu0
    %v401 = vpop.f32.mrb[0].mxu0
    %402 = vdwg.mxu0
    %403 = vmatprep.subr.bf16.mxu0 %v173
    %404 = vmatpush1.bf16.msra.mxu0 %v172
    %405 = vmatprep.subr.bf16.mxu0 %v177
    %406 = vmatpush1.bf16.msra.mxu0 %v176
    %407 = vmatprep.subr.bf16.mxu0 %v181
    %408 = vmatpush1.bf16.msra.mxu0 %v180
    %409 = vmatprep.subr.bf16.mxu0 %v185
    %410 = vmatpush1.bf16.msra.mxu0 %v184
    %411 = vmatprep.subr.bf16.mxu0 %v189
    %412 = vmatpush1.bf16.msra.mxu0 %v188
    %413 = vmatprep.subr.bf16.mxu0 %v193
    %414 = vmatpush1.bf16.msra.mxu0 %v192
    %415 = vmatprep.subr.bf16.mxu0 %v197
    %416 = vmatpush1.bf16.msra.mxu0 %v196
    %417 = vmatprep.subr.bf16.mxu0 %v201
    %418 = vmatpush1.bf16.msra.mxu0 %v200
    %419 = vmatprep.subr.bf16.mxu0 0
    %420 = vmatpush1.bf16.msra.mxu0 0
    %421 = vmatprep.subr.bf16.mxu0 0
    %422 = vmatpush1.bf16.msra.mxu0 0
    %423 = vmatprep.subr.bf16.mxu0 0
    %424 = vmatpush1.bf16.msra.mxu0 0
    %425 = vmatprep.subr.bf16.mxu0 0
    %426 = vmatpush1.bf16.msra.mxu0 0
    %427 = vmatprep.subr.bf16.mxu0 0
    %428 = vmatpush1.bf16.msra.mxu0 0
    %429 = vmatprep.subr.bf16.mxu0 0
    %430 = vmatpush1.bf16.msra.mxu0 0
    %431 = vmatprep.subr.bf16.mxu0 0
    %432 = vmatpush1.bf16.msra.mxu0 0
    %433 = vmatprep.subr.bf16.mxu0 0
    %434 = vmatpush1.bf16.msra.mxu0 0
    %435 = vmatprep.mubr.bf16.mxu0 0
    %436 = vmatmul.mubr.bf16.gmra.mrb[0].mxu0 %v361
    %v437 = vpop.f32.mrb[0].mxu0
    %v438 = vadd.f32 0.0, %v437
    %v439 = vpop.f32.mrb[0].mxu0
    %v440 = vadd.f32 0.0, %v439
    %v441 = vpop.f32.mrb[0].mxu0
    %v442 = vpop.f32.mrb[0].mxu0
    %443 = vdwg.mxu0
    %v448 = vcombine.low %v397, %v399
    %v449 = vcombine.low %v438, %v440
    %v451 = vunpack.c.l.s4 1983009808
    %v452 = vunpack.c.0.s8 %v451
    %v453 = vlaneseq
    %v454 = vshrl.u32 %v453, 7
    %v455 = vsub.s32 %v452, %v454
    %v456 = vrot.slane %v448, %v455
    %v458 = vunpack.c.l.s4 1983009808
    %v459 = vunpack.c.0.s8 %v458
    %v460 = vlaneseq
    %v461 = vshrl.u32 %v460, 7
    %v462 = vsub.s32 %v459, %v461
    %v463 = vrot.slane %v449, %v462
    %v464 = vcombine.low %v456, %v463
    %v466 = vadd.f32 %v360, %v464
    %v467 = vxor.u32 %v466, 2147483648
    %v468 = vmul.f32 %v467, 1.442695
    %v469 = vpow.pop %v468
    %v470 = vadd.f32 %v469, 1.0
    %v471 = vrcp.pop %v470
    %v472 = vmul.f32 1.0, %v471
    %v474 = vrot.slane %v466, 6
    %v476 = vtanh.pop %v474
    %v478 = vrot.slane %v472, 2
    %v480 = vmul.f32 %v478, %v354
    %v481 = vmul.f32 %v472, %v476
    %v482 = vadd.f32 %v480, %v481
    %v483 = vtanh.pop %v482
    %v484 = vrot.slane %v472, 4
    %v486 = vmul.f32 %v484, %v483
    %s487 = scalar_lea.vmem [#allocation2], 16
    %v488 = vld [vmem:[%s487] sm:$0xff]
    %v489 = vpack.c.bf16 %v486, %v486
    %490 = vmatprep.subr.bf16.mxu0 %v171
    %491 = vmatpush1.bf16.msra.mxu0 %v170
    %492 = vmatprep.subr.bf16.mxu0 %v175
    %493 = vmatpush1.bf16.msra.mxu0 %v174
    %494 = vmatprep.subr.bf16.mxu0 %v179
    %495 = vmatpush1.bf16.msra.mxu0 %v178
    %496 = vmatprep.subr.bf16.mxu0 %v183
    %497 = vmatpush1.bf16.msra.mxu0 %v182
    %498 = vmatprep.subr.bf16.mxu0 %v187
    %499 = vmatpush1.bf16.msra.mxu0 %v186
    %500 = vmatprep.subr.bf16.mxu0 %v191
    %501 = vmatpush1.bf16.msra.mxu0 %v190
    %502 = vmatprep.subr.bf16.mxu0 %v195
    %503 = vmatpush1.bf16.msra.mxu0 %v194
    %504 = vmatprep.subr.bf16.mxu0 %v199
    %505 = vmatpush1.bf16.msra.mxu0 %v198
    %506 = vmatprep.subr.bf16.mxu0 0
    %507 = vmatpush1.bf16.msra.mxu0 0
    %508 = vmatprep.subr.bf16.mxu0 0
    %509 = vmatpush1.bf16.msra.mxu0 0
    %510 = vmatprep.subr.bf16.mxu0 0
    %511 = vmatpush1.bf16.msra.mxu0 0
    %512 = vmatprep.subr.bf16.mxu0 0
    %513 = vmatpush1.bf16.msra.mxu0 0
    %514 = vmatprep.subr.bf16.mxu0 0
    %515 = vmatpush1.bf16.msra.mxu0 0
    %516 = vmatprep.subr.bf16.mxu0 0
    %517 = vmatpush1.bf16.msra.mxu0 0
    %518 = vmatprep.subr.bf16.mxu0 0
    %519 = vmatpush1.bf16.msra.mxu0 0
    %520 = vmatprep.subr.bf16.mxu0 0
    %521 = vmatpush1.bf16.msra.mxu0 0
    %522 = vmatprep.mubr.bf16.mxu0 0
    %523 = vmatmul.mubr.bf16.gmra.mrb[0].mxu0 %v489
    %v524 = vpop.f32.mrb[0].mxu0
    %v525 = vadd.f32 0.0, %v524
    %v526 = vpop.f32.mrb[0].mxu0
    %v527 = vadd.f32 0.0, %v526
    %v528 = vpop.f32.mrb[0].mxu0
    %v529 = vpop.f32.mrb[0].mxu0
    %530 = vdwg.mxu0
    %531 = vmatprep.subr.bf16.mxu0 %v173
    %532 = vmatpush1.bf16.msra.mxu0 %v172
    %533 = vmatprep.subr.bf16.mxu0 %v177
    %534 = vmatpush1.bf16.msra.mxu0 %v176
    %535 = vmatprep.subr.bf16.mxu0 %v181
    %536 = vmatpush1.bf16.msra.mxu0 %v180
    %537 = vmatprep.subr.bf16.mxu0 %v185
    %538 = vmatpush1.bf16.msra.mxu0 %v184
    %539 = vmatprep.subr.bf16.mxu0 %v189
    %540 = vmatpush1.bf16.msra.mxu0 %v188
    %541 = vmatprep.subr.bf16.mxu0 %v193
    %542 = vmatpush1.bf16.msra.mxu0 %v192
    %543 = vmatprep.subr.bf16.mxu0 %v197
    %544 = vmatpush1.bf16.msra.mxu0 %v196
    %545 = vmatprep.subr.bf16.mxu0 %v201
    %546 = vmatpush1.bf16.msra.mxu0 %v200
    %547 = vmatprep.subr.bf16.mxu0 0
    %548 = vmatpush1.bf16.msra.mxu0 0
    %549 = vmatprep.subr.bf16.mxu0 0
    %550 = vmatpush1.bf16.msra.mxu0 0
    %551 = vmatprep.subr.bf16.mxu0 0
    %552 = vmatpush1.bf16.msra.mxu0 0
    %553 = vmatprep.subr.bf16.mxu0 0
    %554 = vmatpush1.bf16.msra.mxu0 0
    %555 = vmatprep.subr.bf16.mxu0 0
    %556 = vmatpush1.bf16.msra.mxu0 0
    %557 = vmatprep.subr.bf16.mxu0 0
    %558 = vmatpush1.bf16.msra.mxu0 0
    %559 = vmatprep.subr.bf16.mxu0 0
    %560 = vmatpush1.bf16.msra.mxu0 0
    %561 = vmatprep.subr.bf16.mxu0 0
    %562 = vmatpush1.bf16.msra.mxu0 0
    %563 = vmatprep.mubr.bf16.mxu0 0
    %564 = vmatmul.mubr.bf16.gmra.mrb[0].mxu0 %v489
    %v565 = vpop.f32.mrb[0].mxu0
    %v566 = vadd.f32 0.0, %v565
    %v567 = vpop.f32.mrb[0].mxu0
    %v568 = vadd.f32 0.0, %v567
    %v569 = vpop.f32.mrb[0].mxu0
    %v570 = vpop.f32.mrb[0].mxu0
    %571 = vdwg.mxu0
    %v576 = vcombine.low %v525, %v527
    %v577 = vcombine.low %v566, %v568
    %v579 = vunpack.c.l.s4 1983009808
    %v580 = vunpack.c.0.s8 %v579
    %v581 = vlaneseq
    %v582 = vshrl.u32 %v581, 7
    %v583 = vsub.s32 %v580, %v582
    %v584 = vrot.slane %v576, %v583
    %v586 = vunpack.c.l.s4 1983009808
    %v587 = vunpack.c.0.s8 %v586
    %v588 = vlaneseq
    %v589 = vshrl.u32 %v588, 7
    %v590 = vsub.s32 %v587, %v589
    %v591 = vrot.slane %v577, %v590
    %v592 = vcombine.low %v584, %v591
    %v594 = vadd.f32 %v488, %v592
    %v595 = vxor.u32 %v594, 2147483648
    %v596 = vmul.f32 %v595, 1.442695
    %v597 = vpow.pop %v596
    %v598 = vadd.f32 %v597, 1.0
    %v599 = vrcp.pop %v598
    %v600 = vmul.f32 1.0, %v599
    %v602 = vrot.slane %v594, 6
    %v604 = vtanh.pop %v602
    %v606 = vrot.slane %v600, 2
    %v608 = vmul.f32 %v606, %v482
    %v609 = vmul.f32 %v600, %v604
    %v610 = vadd.f32 %v608, %v609
    %v611 = vtanh.pop %v610
    %v612 = vrot.slane %v600, 4
    %v614 = vmul.f32 %v612, %v611
    %s615 = scalar_lea.vmem [#allocation2], 24
    %v616 = vld [vmem:[%s615] sm:$0xff]
    %v617 = vpack.c.bf16 %v614, %v614
    %618 = vmatprep.subr.bf16.mxu0 %v171
    %619 = vmatpush1.bf16.msra.mxu0 %v170
    %620 = vmatprep.subr.bf16.mxu0 %v175
    %621 = vmatpush1.bf16.msra.mxu0 %v174
    %622 = vmatprep.subr.bf16.mxu0 %v179
    %623 = vmatpush1.bf16.msra.mxu0 %v178
    %624 = vmatprep.subr.bf16.mxu0 %v183
    %625 = vmatpush1.bf16.msra.mxu0 %v182
    %626 = vmatprep.subr.bf16.mxu0 %v187
    %627 = vmatpush1.bf16.msra.mxu0 %v186
    %628 = vmatprep.subr.bf16.mxu0 %v191
    %629 = vmatpush1.bf16.msra.mxu0 %v190
    %630 = vmatprep.subr.bf16.mxu0 %v195
    %631 = vmatpush1.bf16.msra.mxu0 %v194
    %632 = vmatprep.subr.bf16.mxu0 %v199
    %633 = vmatpush1.bf16.msra.mxu0 %v198
    %634 = vmatprep.subr.bf16.mxu0 0
    %635 = vmatpush1.bf16.msra.mxu0 0
    %636 = vmatprep.subr.bf16.mxu0 0
    %637 = vmatpush1.bf16.msra.mxu0 0
    %638 = vmatprep.subr.bf16.mxu0 0
    %639 = vmatpush1.bf16.msra.mxu0 0
    %640 = vmatprep.subr.bf16.mxu0 0
    %641 = vmatpush1.bf16.msra.mxu0 0
    %642 = vmatprep.subr.bf16.mxu0 0
    %643 = vmatpush1.bf16.msra.mxu0 0
    %644 = vmatprep.subr.bf16.mxu0 0
    %645 = vmatpush1.bf16.msra.mxu0 0
    %646 = vmatprep.subr.bf16.mxu0 0
    %647 = vmatpush1.bf16.msra.mxu0 0
    %648 = vmatprep.subr.bf16.mxu0 0
    %649 = vmatpush1.bf16.msra.mxu0 0
    %650 = vmatprep.mubr.bf16.mxu0 0
    %651 = vmatmul.mubr.bf16.gmra.mrb[0].mxu0 %v617
    %v652 = vpop.f32.mrb[0].mxu0
    %v653 = vadd.f32 0.0, %v652
    %v654 = vpop.f32.mrb[0].mxu0
    %v655 = vadd.f32 0.0, %v654
    %v656 = vpop.f32.mrb[0].mxu0
    %v657 = vpop.f32.mrb[0].mxu0
    %658 = vdwg.mxu0
    %659 = vmatprep.subr.bf16.mxu0 %v173
    %660 = vmatpush1.bf16.msra.mxu0 %v172
    %661 = vmatprep.subr.bf16.mxu0 %v177
    %662 = vmatpush1.bf16.msra.mxu0 %v176
    %663 = vmatprep.subr.bf16.mxu0 %v181
    %664 = vmatpush1.bf16.msra.mxu0 %v180
    %665 = vmatprep.subr.bf16.mxu0 %v185
    %666 = vmatpush1.bf16.msra.mxu0 %v184
    %667 = vmatprep.subr.bf16.mxu0 %v189
    %668 = vmatpush1.bf16.msra.mxu0 %v188
    %669 = vmatprep.subr.bf16.mxu0 %v193
    %670 = vmatpush1.bf16.msra.mxu0 %v192
    %671 = vmatprep.subr.bf16.mxu0 %v197
    %672 = vmatpush1.bf16.msra.mxu0 %v196
    %673 = vmatprep.subr.bf16.mxu0 %v201
    %674 = vmatpush1.bf16.msra.mxu0 %v200
    %675 = vmatprep.subr.bf16.mxu0 0
    %676 = vmatpush1.bf16.msra.mxu0 0
    %677 = vmatprep.subr.bf16.mxu0 0
    %678 = vmatpush1.bf16.msra.mxu0 0
    %679 = vmatprep.subr.bf16.mxu0 0
    %680 = vmatpush1.bf16.msra.mxu0 0
    %681 = vmatprep.subr.bf16.mxu0 0
    %682 = vmatpush1.bf16.msra.mxu0 0
    %683 = vmatprep.subr.bf16.mxu0 0
    %684 = vmatpush1.bf16.msra.mxu0 0
    %685 = vmatprep.subr.bf16.mxu0 0
    %686 = vmatpush1.bf16.msra.mxu0 0
    %687 = vmatprep.subr.bf16.mxu0 0
    %688 = vmatpush1.bf16.msra.mxu0 0
    %689 = vmatprep.subr.bf16.mxu0 0
    %690 = vmatpush1.bf16.msra.mxu0 0
    %691 = vmatprep.mubr.bf16.mxu0 0
    %692 = vmatmul.mubr.bf16.gmra.mrb[0].mxu0 %v617
    %v693 = vpop.f32.mrb[0].mxu0
    %v694 = vadd.f32 0.0, %v693
    %v695 = vpop.f32.mrb[0].mxu0
    %v696 = vadd.f32 0.0, %v695
    %v697 = vpop.f32.mrb[0].mxu0
    %v698 = vpop.f32.mrb[0].mxu0
    %699 = vdwg.mxu0
    %v704 = vcombine.low %v653, %v655
    %v705 = vcombine.low %v694, %v696
    %v707 = vunpack.c.l.s4 1983009808
    %v708 = vunpack.c.0.s8 %v707
    %v709 = vlaneseq
    %v710 = vshrl.u32 %v709, 7
    %v711 = vsub.s32 %v708, %v710
    %v712 = vrot.slane %v704, %v711
    %v714 = vunpack.c.l.s4 1983009808
    %v715 = vunpack.c.0.s8 %v714
    %v716 = vlaneseq
    %v717 = vshrl.u32 %v716, 7
    %v718 = vsub.s32 %v715, %v717
    %v719 = vrot.slane %v705, %v718
    %v720 = vcombine.low %v712, %v719
    %v722 = vadd.f32 %v616, %v720
    %v723 = vxor.u32 %v722, 2147483648
    %v724 = vmul.f32 %v723, 1.442695
    %v725 = vpow.pop %v724
    %v726 = vadd.f32 %v725, 1.0
    %v727 = vrcp.pop %v726
    %v728 = vmul.f32 1.0, %v727
    %v730 = vrot.slane %v722, 6
    %v732 = vtanh.pop %v730
    %v734 = vrot.slane %v728, 2
    %v736 = vmul.f32 %v734, %v610
    %v737 = vmul.f32 %v728, %v732
    %v738 = vadd.f32 %v736, %v737
    %v739 = vtanh.pop %v738
    %v740 = vrot.slane %v728, 4
    %v742 = vmul.f32 %v740, %v739
    %s743 = scalar_lea.vmem [#allocation2], 32
    %v744 = vld [vmem:[%s743] sm:$0xff]
    %v745 = vpack.c.bf16 %v742, %v742
    %746 = vmatprep.subr.bf16.mxu0 %v171
    %747 = vmatpush1.bf16.msra.mxu0 %v170
    %748 = vmatprep.subr.bf16.mxu0 %v175
    %749 = vmatpush1.bf16.msra.mxu0 %v174
    %750 = vmatprep.subr.bf16.mxu0 %v179
    %751 = vmatpush1.bf16.msra.mxu0 %v178
    %752 = vmatprep.subr.bf16.mxu0 %v183
    %753 = vmatpush1.bf16.msra.mxu0 %v182
    %754 = vmatprep.subr.bf16.mxu0 %v187
    %755 = vmatpush1.bf16.msra.mxu0 %v186
    %756 = vmatprep.subr.bf16.mxu0 %v191
    %757 = vmatpush1.bf16.msra.mxu0 %v190
    %758 = vmatprep.subr.bf16.mxu0 %v195
    %759 = vmatpush1.bf16.msra.mxu0 %v194
    %760 = vmatprep.subr.bf16.mxu0 %v199
    %761 = vmatpush1.bf16.msra.mxu0 %v198
    %762 = vmatprep.subr.bf16.mxu0 0
    %763 = vmatpush1.bf16.msra.mxu0 0
    %764 = vmatprep.subr.bf16.mxu0 0
    %765 = vmatpush1.bf16.msra.mxu0 0
    %766 = vmatprep.subr.bf16.mxu0 0
    %767 = vmatpush1.bf16.msra.mxu0 0
    %768 = vmatprep.subr.bf16.mxu0 0
    %769 = vmatpush1.bf16.msra.mxu0 0
    %770 = vmatprep.subr.bf16.mxu0 0
    %771 = vmatpush1.bf16.msra.mxu0 0
    %772 = vmatprep.subr.bf16.mxu0 0
    %773 = vmatpush1.bf16.msra.mxu0 0
    %774 = vmatprep.subr.bf16.mxu0 0
    %775 = vmatpush1.bf16.msra.mxu0 0
    %776 = vmatprep.subr.bf16.mxu0 0
    %777 = vmatpush1.bf16.msra.mxu0 0
    %778 = vmatprep.mubr.bf16.mxu0 0
    %779 = vmatmul.mubr.bf16.gmra.mrb[0].mxu0 %v745
    %v780 = vpop.f32.mrb[0].mxu0
    %v781 = vadd.f32 0.0, %v780
    %v782 = vpop.f32.mrb[0].mxu0
    %v783 = vadd.f32 0.0, %v782
    %v784 = vpop.f32.mrb[0].mxu0
    %v785 = vpop.f32.mrb[0].mxu0
    %786 = vdwg.mxu0
    %787 = vmatprep.subr.bf16.mxu0 %v173
    %788 = vmatpush1.bf16.msra.mxu0 %v172
    %789 = vmatprep.subr.bf16.mxu0 %v177
    %790 = vmatpush1.bf16.msra.mxu0 %v176
    %791 = vmatprep.subr.bf16.mxu0 %v181
    %792 = vmatpush1.bf16.msra.mxu0 %v180
    %793 = vmatprep.subr.bf16.mxu0 %v185
    %794 = vmatpush1.bf16.msra.mxu0 %v184
    %795 = vmatprep.subr.bf16.mxu0 %v189
    %796 = vmatpush1.bf16.msra.mxu0 %v188
    %797 = vmatprep.subr.bf16.mxu0 %v193
    %798 = vmatpush1.bf16.msra.mxu0 %v192
    %799 = vmatprep.subr.bf16.mxu0 %v197
    %800 = vmatpush1.bf16.msra.mxu0 %v196
    %801 = vmatprep.subr.bf16.mxu0 %v201
    %802 = vmatpush1.bf16.msra.mxu0 %v200
    %803 = vmatprep.subr.bf16.mxu0 0
    %804 = vmatpush1.bf16.msra.mxu0 0
    %805 = vmatprep.subr.bf16.mxu0 0
    %806 = vmatpush1.bf16.msra.mxu0 0
    %807 = vmatprep.subr.bf16.mxu0 0
    %808 = vmatpush1.bf16.msra.mxu0 0
    %809 = vmatprep.subr.bf16.mxu0 0
    %810 = vmatpush1.bf16.msra.mxu0 0
    %811 = vmatprep.subr.bf16.mxu0 0
    %812 = vmatpush1.bf16.msra.mxu0 0
    %813 = vmatprep.subr.bf16.mxu0 0
    %814 = vmatpush1.bf16.msra.mxu0 0
    %815 = vmatprep.subr.bf16.mxu0 0
    %816 = vmatpush1.bf16.msra.mxu0 0
    %817 = vmatprep.subr.bf16.mxu0 0
    %818 = vmatpush1.bf16.msra.mxu0 0
    %819 = vmatprep.mubr.bf16.mxu0 0
    %820 = vmatmul.mubr.bf16.gmra.mrb[0].mxu0 %v745
    %v821 = vpop.f32.mrb[0].mxu0
    %v822 = vadd.f32 0.0, %v821
    %v823 = vpop.f32.mrb[0].mxu0
    %v824 = vadd.f32 0.0, %v823
    %v825 = vpop.f32.mrb[0].mxu0
    %v826 = vpop.f32.mrb[0].mxu0
    %827 = vdwg.mxu0
    %v832 = vcombine.low %v781, %v783
    %v833 = vcombine.low %v822, %v824
    %v835 = vunpack.c.l.s4 1983009808
    %v836 = vunpack.c.0.s8 %v835
    %v837 = vlaneseq
    %v838 = vshrl.u32 %v837, 7
    %v839 = vsub.s32 %v836, %v838
    %v840 = vrot.slane %v832, %v839
    %v842 = vunpack.c.l.s4 1983009808
    %v843 = vunpack.c.0.s8 %v842
    %v844 = vlaneseq
    %v845 = vshrl.u32 %v844, 7
    %v846 = vsub.s32 %v843, %v845
    %v847 = vrot.slane %v833, %v846
    %v848 = vcombine.low %v840, %v847
    %v850 = vadd.f32 %v744, %v848
    %v851 = vxor.u32 %v850, 2147483648
    %v852 = vmul.f32 %v851, 1.442695
    %v853 = vpow.pop %v852
    %v854 = vadd.f32 %v853, 1.0
    %v855 = vrcp.pop %v854
    %v856 = vmul.f32 1.0, %v855
    %v858 = vrot.slane %v850, 6
    %v860 = vtanh.pop %v858
    %v862 = vrot.slane %v856, 2
    %v864 = vmul.f32 %v862, %v738
    %v865 = vmul.f32 %v856, %v860
    %v866 = vadd.f32 %v864, %v865
    %v867 = vtanh.pop %v866
    %v868 = vrot.slane %v856, 4
    %v870 = vmul.f32 %v868, %v867
    %s871 = scalar_lea.vmem [#allocation2], 40
    %v872 = vld [vmem:[%s871] sm:$0xff]
    %v873 = vpack.c.bf16 %v870, %v870
    %874 = vmatprep.subr.bf16.mxu0 %v171
    %875 = vmatpush1.bf16.msra.mxu0 %v170
    %876 = vmatprep.subr.bf16.mxu0 %v175
    %877 = vmatpush1.bf16.msra.mxu0 %v174
    %878 = vmatprep.subr.bf16.mxu0 %v179
    %879 = vmatpush1.bf16.msra.mxu0 %v178
    %880 = vmatprep.subr.bf16.mxu0 %v183
    %881 = vmatpush1.bf16.msra.mxu0 %v182
    %882 = vmatprep.subr.bf16.mxu0 %v187
    %883 = vmatpush1.bf16.msra.mxu0 %v186
    %884 = vmatprep.subr.bf16.mxu0 %v191
    %885 = vmatpush1.bf16.msra.mxu0 %v190
    %886 = vmatprep.subr.bf16.mxu0 %v195
    %887 = vmatpush1.bf16.msra.mxu0 %v194
    %888 = vmatprep.subr.bf16.mxu0 %v199
    %889 = vmatpush1.bf16.msra.mxu0 %v198
    %890 = vmatprep.subr.bf16.mxu0 0
    %891 = vmatpush1.bf16.msra.mxu0 0
    %892 = vmatprep.subr.bf16.mxu0 0
    %893 = vmatpush1.bf16.msra.mxu0 0
    %894 = vmatprep.subr.bf16.mxu0 0
    %895 = vmatpush1.bf16.msra.mxu0 0
    %896 = vmatprep.subr.bf16.mxu0 0
    %897 = vmatpush1.bf16.msra.mxu0 0
    %898 = vmatprep.subr.bf16.mxu0 0
    %899 = vmatpush1.bf16.msra.mxu0 0
    %900 = vmatprep.subr.bf16.mxu0 0
    %901 = vmatpush1.bf16.msra.mxu0 0
    %902 = vmatprep.subr.bf16.mxu0 0
    %903 = vmatpush1.bf16.msra.mxu0 0
    %904 = vmatprep.subr.bf16.mxu0 0
    %905 = vmatpush1.bf16.msra.mxu0 0
    %906 = vmatprep.mubr.bf16.mxu0 0
    %907 = vmatmul.mubr.bf16.gmra.mrb[0].mxu0 %v873
    %v908 = vpop.f32.mrb[0].mxu0
    %v909 = vadd.f32 0.0, %v908
    %v910 = vpop.f32.mrb[0].mxu0
    %v911 = vadd.f32 0.0, %v910
    %v912 = vpop.f32.mrb[0].mxu0
    %v913 = vpop.f32.mrb[0].mxu0
    %914 = vdwg.mxu0
    %915 = vmatprep.subr.bf16.mxu0 %v173
    %916 = vmatpush1.bf16.msra.mxu0 %v172
    %917 = vmatprep.subr.bf16.mxu0 %v177
    %918 = vmatpush1.bf16.msra.mxu0 %v176
    %919 = vmatprep.subr.bf16.mxu0 %v181
    %920 = vmatpush1.bf16.msra.mxu0 %v180
    %921 = vmatprep.subr.bf16.mxu0 %v185
    %922 = vmatpush1.bf16.msra.mxu0 %v184
    %923 = vmatprep.subr.bf16.mxu0 %v189
    %924 = vmatpush1.bf16.msra.mxu0 %v188
    %925 = vmatprep.subr.bf16.mxu0 %v193
    %926 = vmatpush1.bf16.msra.mxu0 %v192
    %927 = vmatprep.subr.bf16.mxu0 %v197
    %928 = vmatpush1.bf16.msra.mxu0 %v196
    %929 = vmatprep.subr.bf16.mxu0 %v201
    %930 = vmatpush1.bf16.msra.mxu0 %v200
    %931 = vmatprep.subr.bf16.mxu0 0
    %932 = vmatpush1.bf16.msra.mxu0 0
    %933 = vmatprep.subr.bf16.mxu0 0
    %934 = vmatpush1.bf16.msra.mxu0 0
    %935 = vmatprep.subr.bf16.mxu0 0
    %936 = vmatpush1.bf16.msra.mxu0 0
    %937 = vmatprep.subr.bf16.mxu0 0
    %938 = vmatpush1.bf16.msra.mxu0 0
    %939 = vmatprep.subr.bf16.mxu0 0
    %940 = vmatpush1.bf16.msra.mxu0 0
    %941 = vmatprep.subr.bf16.mxu0 0
    %942 = vmatpush1.bf16.msra.mxu0 0
    %943 = vmatprep.subr.bf16.mxu0 0
    %944 = vmatpush1.bf16.msra.mxu0 0
    %945 = vmatprep.subr.bf16.mxu0 0
    %946 = vmatpush1.bf16.msra.mxu0 0
    %947 = vmatprep.mubr.bf16.mxu0 0
    %948 = vmatmul.mubr.bf16.gmra.mrb[0].mxu0 %v873
    %v949 = vpop.f32.mrb[0].mxu0
    %v950 = vadd.f32 0.0, %v949
    %v951 = vpop.f32.mrb[0].mxu0
    %v952 = vadd.f32 0.0, %v951
    %v953 = vpop.f32.mrb[0].mxu0
    %v954 = vpop.f32.mrb[0].mxu0
    %955 = vdwg.mxu0
    %v960 = vcombine.low %v909, %v911
    %v961 = vcombine.low %v950, %v952
    %v963 = vunpack.c.l.s4 1983009808
    %v964 = vunpack.c.0.s8 %v963
    %v965 = vlaneseq
    %v966 = vshrl.u32 %v965, 7
    %v967 = vsub.s32 %v964, %v966
    %v968 = vrot.slane %v960, %v967
    %v970 = vunpack.c.l.s4 1983009808
    %v971 = vunpack.c.0.s8 %v970
    %v972 = vlaneseq
    %v973 = vshrl.u32 %v972, 7
    %v974 = vsub.s32 %v971, %v973
    %v975 = vrot.slane %v961, %v974
    %v976 = vcombine.low %v968, %v975
    %v978 = vadd.f32 %v872, %v976
    %v979 = vxor.u32 %v978, 2147483648
    %v980 = vmul.f32 %v979, 1.442695
    %v981 = vpow.pop %v980
    %v982 = vadd.f32 %v981, 1.0
    %v983 = vrcp.pop %v982
    %v984 = vmul.f32 1.0, %v983
    %v986 = vrot.slane %v978, 6
    %v988 = vtanh.pop %v986
    %v990 = vrot.slane %v984, 2
    %v992 = vmul.f32 %v990, %v866
    %v993 = vmul.f32 %v984, %v988
    %v994 = vadd.f32 %v992, %v993
    %v995 = vtanh.pop %v994
    %v996 = vrot.slane %v984, 4
    %v998 = vmul.f32 %v996, %v995
    %s999 = scalar_lea.vmem [#allocation2], 48
    %v1000 = vld [vmem:[%s999] sm:$0xff]
    %v1001 = vpack.c.bf16 %v998, %v998
    %1002 = vmatprep.subr.bf16.mxu0 %v171
    %1003 = vmatpush1.bf16.msra.mxu0 %v170
    %1004 = vmatprep.subr.bf16.mxu0 %v175
    %1005 = vmatpush1.bf16.msra.mxu0 %v174
    %1006 = vmatprep.subr.bf16.mxu0 %v179
    %1007 = vmatpush1.bf16.msra.mxu0 %v178
    %1008 = vmatprep.subr.bf16.mxu0 %v183
    %1009 = vmatpush1.bf16.msra.mxu0 %v182
    %1010 = vmatprep.subr.bf16.mxu0 %v187
    %1011 = vmatpush1.bf16.msra.mxu0 %v186
    %1012 = vmatprep.subr.bf16.mxu0 %v191
    %1013 = vmatpush1.bf16.msra.mxu0 %v190
    %1014 = vmatprep.subr.bf16.mxu0 %v195
    %1015 = vmatpush1.bf16.msra.mxu0 %v194
    %1016 = vmatprep.subr.bf16.mxu0 %v199
    %1017 = vmatpush1.bf16.msra.mxu0 %v198
    %1018 = vmatprep.subr.bf16.mxu0 0
    %1019 = vmatpush1.bf16.msra.mxu0 0
    %1020 = vmatprep.subr.bf16.mxu0 0
    %1021 = vmatpush1.bf16.msra.mxu0 0
    %1022 = vmatprep.subr.bf16.mxu0 0
    %1023 = vmatpush1.bf16.msra.mxu0 0
    %1024 = vmatprep.subr.bf16.mxu0 0
    %1025 = vmatpush1.bf16.msra.mxu0 0
    %1026 = vmatprep.subr.bf16.mxu0 0
    %1027 = vmatpush1.bf16.msra.mxu0 0
    %1028 = vmatprep.subr.bf16.mxu0 0
    %1029 = vmatpush1.bf16.msra.mxu0 0
    %1030 = vmatprep.subr.bf16.mxu0 0
    %1031 = vmatpush1.bf16.msra.mxu0 0
    %1032 = vmatprep.subr.bf16.mxu0 0
    %1033 = vmatpush1.bf16.msra.mxu0 0
    %1034 = vmatprep.mubr.bf16.mxu0 0
    %1035 = vmatmul.mubr.bf16.gmra.mrb[0].mxu0 %v1001
    %v1036 = vpop.f32.mrb[0].mxu0
    %v1037 = vadd.f32 0.0, %v1036
    %v1038 = vpop.f32.mrb[0].mxu0
    %v1039 = vadd.f32 0.0, %v1038
    %v1040 = vpop.f32.mrb[0].mxu0
    %v1041 = vpop.f32.mrb[0].mxu0
    %1042 = vdwg.mxu0
    %1043 = vmatprep.subr.bf16.mxu0 %v173
    %1044 = vmatpush1.bf16.msra.mxu0 %v172
    %1045 = vmatprep.subr.bf16.mxu0 %v177
    %1046 = vmatpush1.bf16.msra.mxu0 %v176
    %1047 = vmatprep.subr.bf16.mxu0 %v181
    %1048 = vmatpush1.bf16.msra.mxu0 %v180
    %1049 = vmatprep.subr.bf16.mxu0 %v185
    %1050 = vmatpush1.bf16.msra.mxu0 %v184
    %1051 = vmatprep.subr.bf16.mxu0 %v189
    %1052 = vmatpush1.bf16.msra.mxu0 %v188
    %1053 = vmatprep.subr.bf16.mxu0 %v193
    %1054 = vmatpush1.bf16.msra.mxu0 %v192
    %1055 = vmatprep.subr.bf16.mxu0 %v197
    %1056 = vmatpush1.bf16.msra.mxu0 %v196
    %1057 = vmatprep.subr.bf16.mxu0 %v201
    %1058 = vmatpush1.bf16.msra.mxu0 %v200
    %1059 = vmatprep.subr.bf16.mxu0 0
    %1060 = vmatpush1.bf16.msra.mxu0 0
    %1061 = vmatprep.subr.bf16.mxu0 0
    %1062 = vmatpush1.bf16.msra.mxu0 0
    %1063 = vmatprep.subr.bf16.mxu0 0
    %1064 = vmatpush1.bf16.msra.mxu0 0
    %1065 = vmatprep.subr.bf16.mxu0 0
    %1066 = vmatpush1.bf16.msra.mxu0 0
    %1067 = vmatprep.subr.bf16.mxu0 0
    %1068 = vmatpush1.bf16.msra.mxu0 0
    %1069 = vmatprep.subr.bf16.mxu0 0
    %1070 = vmatpush1.bf16.msra.mxu0 0
    %1071 = vmatprep.subr.bf16.mxu0 0
    %1072 = vmatpush1.bf16.msra.mxu0 0
    %1073 = vmatprep.subr.bf16.mxu0 0
    %1074 = vmatpush1.bf16.msra.mxu0 0
    %1075 = vmatprep.mubr.bf16.mxu0 0
    %1076 = vmatmul.mubr.bf16.gmra.mrb[0].mxu0 %v1001
    %v1077 = vpop.f32.mrb[0].mxu0
    %v1078 = vadd.f32 0.0, %v1077
    %v1079 = vpop.f32.mrb[0].mxu0
    %v1080 = vadd.f32 0.0, %v1079
    %v1081 = vpop.f32.mrb[0].mxu0
    %v1082 = vpop.f32.mrb[0].mxu0
    %1083 = vdwg.mxu0
    %v1088 = vcombine.low %v1037, %v1039
    %v1089 = vcombine.low %v1078, %v1080
    %v1091 = vunpack.c.l.s4 1983009808
    %v1092 = vunpack.c.0.s8 %v1091
    %v1093 = vlaneseq
    %v1094 = vshrl.u32 %v1093, 7
    %v1095 = vsub.s32 %v1092, %v1094
    %v1096 = vrot.slane %v1088, %v1095
    %v1098 = vunpack.c.l.s4 1983009808
    %v1099 = vunpack.c.0.s8 %v1098
    %v1100 = vlaneseq
    %v1101 = vshrl.u32 %v1100, 7
    %v1102 = vsub.s32 %v1099, %v1101
    %v1103 = vrot.slane %v1089, %v1102
    %v1104 = vcombine.low %v1096, %v1103
    %v1106 = vadd.f32 %v1000, %v1104
    %v1107 = vxor.u32 %v1106, 2147483648
    %v1108 = vmul.f32 %v1107, 1.442695
    %v1109 = vpow.pop %v1108
    %v1110 = vadd.f32 %v1109, 1.0
    %v1111 = vrcp.pop %v1110
    %v1112 = vmul.f32 1.0, %v1111
    %v1114 = vrot.slane %v1106, 6
    %v1116 = vtanh.pop %v1114
    %v1118 = vrot.slane %v1112, 2
    %v1120 = vmul.f32 %v1118, %v994
    %v1121 = vmul.f32 %v1112, %v1116
    %v1122 = vadd.f32 %v1120, %v1121
    %v1123 = vtanh.pop %v1122
    %v1124 = vrot.slane %v1112, 4
    %v1126 = vmul.f32 %v1124, %v1123
    %s1127 = scalar_lea.vmem [#allocation2], 56
    %v1128 = vld [vmem:[%s1127] sm:$0xff]
    %v1129 = vpack.c.bf16 %v1126, %v1126
    %1130 = vmatprep.subr.bf16.mxu0 %v171
    %1131 = vmatpush1.bf16.msra.mxu0 %v170
    %1132 = vmatprep.subr.bf16.mxu0 %v175
    %1133 = vmatpush1.bf16.msra.mxu0 %v174
    %1134 = vmatprep.subr.bf16.mxu0 %v179
    %1135 = vmatpush1.bf16.msra.mxu0 %v178
    %1136 = vmatprep.subr.bf16.mxu0 %v183
    %1137 = vmatpush1.bf16.msra.mxu0 %v182
    %1138 = vmatprep.subr.bf16.mxu0 %v187
    %1139 = vmatpush1.bf16.msra.mxu0 %v186
    %1140 = vmatprep.subr.bf16.mxu0 %v191
    %1141 = vmatpush1.bf16.msra.mxu0 %v190
    %1142 = vmatprep.subr.bf16.mxu0 %v195
    %1143 = vmatpush1.bf16.msra.mxu0 %v194
    %1144 = vmatprep.subr.bf16.mxu0 %v199
    %1145 = vmatpush1.bf16.msra.mxu0 %v198
    %1146 = vmatprep.subr.bf16.mxu0 0
    %1147 = vmatpush1.bf16.msra.mxu0 0
    %1148 = vmatprep.subr.bf16.mxu0 0
    %1149 = vmatpush1.bf16.msra.mxu0 0
    %1150 = vmatprep.subr.bf16.mxu0 0
    %1151 = vmatpush1.bf16.msra.mxu0 0
    %1152 = vmatprep.subr.bf16.mxu0 0
    %1153 = vmatpush1.bf16.msra.mxu0 0
    %1154 = vmatprep.subr.bf16.mxu0 0
    %1155 = vmatpush1.bf16.msra.mxu0 0
    %1156 = vmatprep.subr.bf16.mxu0 0
    %1157 = vmatpush1.bf16.msra.mxu0 0
    %1158 = vmatprep.subr.bf16.mxu0 0
    %1159 = vmatpush1.bf16.msra.mxu0 0
    %1160 = vmatprep.subr.bf16.mxu0 0
    %1161 = vmatpush1.bf16.msra.mxu0 0
    %1162 = vmatprep.mubr.bf16.mxu0 0
    %1163 = vmatmul.mubr.bf16.gmra.mrb[0].mxu0 %v1129
    %v1164 = vpop.f32.mrb[0].mxu0
    %v1165 = vadd.f32 0.0, %v1164
    %v1166 = vpop.f32.mrb[0].mxu0
    %v1167 = vadd.f32 0.0, %v1166
    %v1168 = vpop.f32.mrb[0].mxu0
    %v1169 = vpop.f32.mrb[0].mxu0
    %1170 = vdwg.mxu0
    %1171 = vmatprep.subr.bf16.mxu0 %v173
    %1172 = vmatpush1.bf16.msra.mxu0 %v172
    %1173 = vmatprep.subr.bf16.mxu0 %v177
    %1174 = vmatpush1.bf16.msra.mxu0 %v176
    %1175 = vmatprep.subr.bf16.mxu0 %v181
    %1176 = vmatpush1.bf16.msra.mxu0 %v180
    %1177 = vmatprep.subr.bf16.mxu0 %v185
    %1178 = vmatpush1.bf16.msra.mxu0 %v184
    %1179 = vmatprep.subr.bf16.mxu0 %v189
    %1180 = vmatpush1.bf16.msra.mxu0 %v188
    %1181 = vmatprep.subr.bf16.mxu0 %v193
    %1182 = vmatpush1.bf16.msra.mxu0 %v192
    %1183 = vmatprep.subr.bf16.mxu0 %v197
    %1184 = vmatpush1.bf16.msra.mxu0 %v196
    %1185 = vmatprep.subr.bf16.mxu0 %v201
    %1186 = vmatpush1.bf16.msra.mxu0 %v200
    %1187 = vmatprep.subr.bf16.mxu0 0
    %1188 = vmatpush1.bf16.msra.mxu0 0
    %1189 = vmatprep.subr.bf16.mxu0 0
    %1190 = vmatpush1.bf16.msra.mxu0 0
    %1191 = vmatprep.subr.bf16.mxu0 0
    %1192 = vmatpush1.bf16.msra.mxu0 0
    %1193 = vmatprep.subr.bf16.mxu0 0
    %1194 = vmatpush1.bf16.msra.mxu0 0
    %1195 = vmatprep.subr.bf16.mxu0 0
    %1196 = vmatpush1.bf16.msra.mxu0 0
    %1197 = vmatprep.subr.bf16.mxu0 0
    %1198 = vmatpush1.bf16.msra.mxu0 0
    %1199 = vmatprep.subr.bf16.mxu0 0
    %1200 = vmatpush1.bf16.msra.mxu0 0
    %1201 = vmatprep.subr.bf16.mxu0 0
    %1202 = vmatpush1.bf16.msra.mxu0 0
    %1203 = vmatprep.mubr.bf16.mxu0 0
    %1204 = vmatmul.mubr.bf16.gmra.mrb[0].mxu0 %v1129
    %v1205 = vpop.f32.mrb[0].mxu0
    %v1206 = vadd.f32 0.0, %v1205
    %v1207 = vpop.f32.mrb[0].mxu0
    %v1208 = vadd.f32 0.0, %v1207
    %v1209 = vpop.f32.mrb[0].mxu0
    %v1210 = vpop.f32.mrb[0].mxu0
    %1211 = vdwg.mxu0
    %v1216 = vcombine.low %v1165, %v1167
    %v1217 = vcombine.low %v1206, %v1208
    %v1219 = vunpack.c.l.s4 1983009808
    %v1220 = vunpack.c.0.s8 %v1219
    %v1221 = vlaneseq
    %v1222 = vshrl.u32 %v1221, 7
    %v1223 = vsub.s32 %v1220, %v1222
    %v1224 = vrot.slane %v1216, %v1223
    %v1226 = vunpack.c.l.s4 1983009808
    %v1227 = vunpack.c.0.s8 %v1226
    %v1228 = vlaneseq
    %v1229 = vshrl.u32 %v1228, 7
    %v1230 = vsub.s32 %v1227, %v1229
    %v1231 = vrot.slane %v1217, %v1230
    %v1232 = vcombine.low %v1224, %v1231
    %v1234 = vadd.f32 %v1128, %v1232
    %v1235 = vxor.u32 %v1234, 2147483648
    %v1236 = vmul.f32 %v1235, 1.442695
    %v1237 = vpow.pop %v1236
    %v1238 = vadd.f32 %v1237, 1.0
    %v1239 = vrcp.pop %v1238
    %v1240 = vmul.f32 1.0, %v1239
    %v1242 = vrot.slane %v1234, 6
    %v1244 = vtanh.pop %v1242
    %v1246 = vrot.slane %v1240, 2
    %v1248 = vmul.f32 %v1246, %v1122
    %v1249 = vmul.f32 %v1240, %v1244
    %v1250 = vadd.f32 %v1248, %v1249
    %v1251 = vtanh.pop %v1250
    %v1252 = vrot.slane %v1240, 4
    %v1254 = vmul.f32 %v1252, %v1251
    %1255 = vst [vmem:[#allocation7] sm:$0x3] %v1254
    // Predicated region
    $region18: #{tpu_custom_call.1} parent=1 // pred_check
      _
    $region19: #{tpu_custom_call.1} parent=1 // pred_check_branch
      %1257 = sbr.rel (0) target = $region21
    $region20: #{tpu_custom_call.1} parent=1 // pred_region
      %s1259 = ssub.s32 32, 32
      %1260 = vsyncadd [#allocation4], %s1259
      %s1262 = sshll.u32 [#allocation7], 4
      %s1263 = int_to_ptr.vmem [resolvable:$true] %s1262
      %1265 = dma.vmem_to_hbm [thread:$0]  %s1263, 32, %s2, [#allocation4]
    $region21: #{tpu_custom_call.1} parent=1 // pred_fallthru
      _
    // Predicated region
    $region22: #{tpu_custom_call.1} parent=1 // pred_check
      _
    $region23: #{tpu_custom_call.1} parent=1 // pred_check_branch
      %1267 = sbr.rel (0) target = $region25
    $region24: #{tpu_custom_call.1} parent=1 // pred_region
      %1268 = dma.done [#allocation4], 32
    $region25: #{tpu_custom_call.1} parent=1 // pred_fallthru
      _
    %1269 = vsyncpa [#allocation3], 1
    %1270 = vsyncpa [#allocation6], 1
    %1271 = vsyncpa [#allocation4], 1

</llo_original>
